<compile_context>
chip_gen: v7x
topology: tpu7x:2x2x1
jax: 0.10.0
libtpu: 0.0.40
codegen_flags: <defaults>
</compile_context>

<pallas_src>
import functools
import math

import jax
import jax.numpy as jnp
from jax import lax
from jax.experimental import pallas as pl
from jax.experimental.pallas import tpu as pltpu

_MIB = 1024 * 1024


def _round_up(n, m):
    return ((n + m - 1) // m) * m


def _cdiv(a, b):
    return -(-a // b)


def _gelu(x, approximate):
    if approximate:
        # tanh approximation routes transcendentals to the EUP slot.
        c = math.sqrt(2.0 / math.pi)
        return 0.5 * x * (1.0 + jnp.tanh(c * (x + 0.044715 * x * x * x)))
    # nn.GELU() default (approximate='none'): 0.5 * x * (1 + erf(x / sqrt(2)))
    return 0.5 * x * (1.0 + lax.erf(x * (1.0 / math.sqrt(2.0))))


# --------------------------------------------------------------------------------------
# Generation-aware configuration
# --------------------------------------------------------------------------------------

def _tpu_generation():
    try:
        kind = jax.devices()[0].device_kind.lower()
    except Exception:
        return "unknown"
    if "v5 lite" in kind or "v5e" in kind or "v5lite" in kind:
        return "v5e"
    if "v6" in kind or "trillium" in kind:
        return "v6e"
    if "v7" in kind or "7x" in kind:
        return "v7x"
    if "v5" in kind:
        return "v5p"
    return "unknown"


def _vmem_capacity_bytes(gen):
    try:
        cap = int(pltpu.get_tpu_info().vmem_capacity_bytes)
        if cap > 0:
            return cap
    except Exception:
        pass
    return (64 if gen == "v7x" else 128) * _MIB


def _vmem_budget(gen):
    """Returns (tile-selection budget, vmem_limit cap) in bytes."""
    cap = _vmem_capacity_bytes(gen)
    if cap <= 64 * _MIB:
        # v7x-class: 64 MiB physical; leave headroom for compiler internal scratch.
        limit_cap = min(cap - 8 * _MIB, 56 * _MIB)
        budget = min(40 * _MIB, limit_cap - 8 * _MIB)
    else:
        # v5e / v6e: 128 MiB physical.
        limit_cap = min(cap - 16 * _MIB, 112 * _MIB)
        budget = min(100 * _MIB, limit_cap - 8 * _MIB)
    return budget, limit_cap


def _row_align(dtype):
    # f32 -> 8 sublanes, bf16 -> 16, int8/fp8 -> 32 (packed sublane layout).
    return max(8, 32 // jnp.dtype(dtype).itemsize)


def _vmem_bytes(tm, dp, th, hp, x_dtype, w_dtype, out_dtype):
    """Rough per-kernel VMEM footprint with default double-buffering."""
    xb = jnp.dtype(x_dtype).itemsize
    wb = jnp.dtype(w_dtype).itemsize
    ob = jnp.dtype(out_dtype).itemsize
    db = 2  # double buffering
    total = 0
    total += tm * dp * xb * db          # x tile
    total += tm * dp * ob * db          # out tile
    total += dp * th * wb * db          # w1 slice
    total += th * dp * wb * db          # w2 slice
    total += (th + dp) * wb * db        # biases
    total += tm * th * 4 * 2            # f32 hidden activation + temporaries
    if th < hp:
        total += tm * dp * 4            # f32 accumulator scratch
    return total


_TM_TARGET = {"v6e": 1024, "v5e": 512, "v5p": 512, "v7x": 512, "unknown": 512}


def _pick_th(hp, fits):
    """Largest exact divisor of hp (multiple of 128) that fits the VMEM budget.
    Prefers 256-aligned divisors (v6e/v7x MXU is 2x256x256). None if nothing fits."""
    n = hp // 128
    divs = [128 * d for d in range(n, 0, -1) if n % d == 0]
    for th in divs:
        if th % 256 == 0 and fits(th):
            return th
    for th in divs:
        if fits(th):
            return th
    return None


def _select_tiles(M, dp, hp, x_dtype, w_dtype, out_dtype, tile_m, tile_h, gen, budget):
    align = _row_align(x_dtype)
    target = tile_m if tile_m is not None else _TM_TARGET.get(gen, 512)
    tm = _round_up(max(align, min(target, _round_up(M, align))), align)

    # v7x megacore: ensure >= 2 M tiles when M is big enough, so the "parallel" axis
    # actually splits across both TensorCores.
    if gen == "v7x" and tile_m is None and tm >= _round_up(M, align) and M >= 8 * align:
        tm = _round_up(_cdiv(M, 2), align)

    if tile_h is not None:
        th = min(_round_up(max(tile_h, 128), 128), hp)
        return tm, th, _round_up(hp, th)

    th = None
    while True:
        def fits(t, _tm=tm):
            return _vmem_bytes(_tm, dp, t, hp, x_dtype, w_dtype, out_dtype) <= budget
        th = _pick_th(hp, fits)
        if th is not None or tm <= 4 * align:
            break
        tm = max(align, _round_up(tm // 2, align))
    if th is None:
        th = 128
    return tm, th, hp


# --------------------------------------------------------------------------------------
# Kernels
# --------------------------------------------------------------------------------------

def _mlp_kernel_resident(x_ref, w1_ref, b1_ref, w2_ref, b2_ref, o_ref, *,
                         approximate_gelu):
    """Single H step: full W1/W2 resident in VMEM (constant block index across M tiles)."""
    h = jnp.dot(x_ref[...], w1_ref[...], preferred_element_type=jnp.float32)
    h = _gelu(h + b1_ref[...].astype(jnp.float32), approximate_gelu)
    out = jnp.dot(h.astype(w2_ref.dtype), w2_ref[...],
                  preferred_element_type=jnp.float32)
    o_ref[...] = (out + b2_ref[...].astype(jnp.float32)).astype(o_ref.dtype)


def _mlp_kernel_htiled(x_ref, w1_ref, b1_ref, w2_ref, b2_ref, o_ref, acc_ref, *,
                       approximate_gelu):
    """H-chunked reduction: f32 accumulator persists across the last ('arbitrary') axis."""
    h_idx = pl.program_id(1)

    @pl.when(h_idx == 0)
    def _():
        acc_ref[...] = jnp.zeros_like(acc_ref)

    h = jnp.dot(x_ref[...], w1_ref[...], preferred_element_type=jnp.float32)
    h = _gelu(h + b1_ref[...].astype(jnp.float32), approximate_gelu)
    acc_ref[...] += jnp.dot(h.astype(w2_ref.dtype), w2_ref[...],
                            preferred_element_type=jnp.float32)

    @pl.when(h_idx == pl.num_programs(1) - 1)
    def _():
        o_ref[...] = (acc_ref[...] + b2_ref[...].astype(jnp.float32)).astype(o_ref.dtype)


# --------------------------------------------------------------------------------------
# Wrapper
# --------------------------------------------------------------------------------------

def mlp_forward(x, w1, b1, w2, b2, *, tile_m=None, tile_h=None,
                approximate_gelu=False, vmem_limit_bytes=None):
    """x: [B, T, D] -> [B, T, D]. c_fc -> GELU -> c_proj fused in one Pallas kernel."""
    B, T, D = x.shape
    Din, H = w1.shape
    assert Din == D and w2.shape == (H, D) and b1.shape == (H,) and b2.shape == (D,)
    M = B * T

    Dp = _round_up(D, 128)
    Hp = _round_up(H, 128)

    gen = _tpu_generation()
    budget, limit_cap = _vmem_budget(gen)
    tm, th, Hp = _select_tiles(M, Dp, Hp, x.dtype, w1.dtype, x.dtype,
                               tile_m, tile_h, gen, budget)
    Mp = _round_up(M, tm)

    # Zero-padding is numerically safe: gelu(0) == 0 and padded weight rows/cols are zero.
    x2 = x.reshape(M, D)
    if (Mp, Dp) != (M, D):
        x2 = jnp.pad(x2, ((0, Mp - M), (0, Dp - D)))
    w1p = jnp.pad(w1, ((0, Dp - D), (0, Hp - H))) if (Dp, Hp) != (D, H) else w1
    b1p = (jnp.pad(b1, (0, Hp - H)) if Hp != H else b1).reshape(1, Hp)
    w2p = jnp.pad(w2, ((0, Hp - H), (0, Dp - D))) if (Hp, Dp) != (H, D) else w2
    b2p = (jnp.pad(b2, (0, Dp - D)) if Dp != D else b2).reshape(1, Dp)

    need = _vmem_bytes(tm, Dp, th, Hp, x2.dtype, w1p.dtype, x.dtype)
    if vmem_limit_bytes is None:
        vmem_limit_bytes = int(min(limit_cap, max(32 * _MIB, int(1.25 * need))))

    n_m, n_h = Mp // tm, Hp // th

    cost = pl.CostEstimate(
        flops=int(4 * Mp * Dp * Hp),
        transcendentals=int(Mp * Hp),
        bytes_accessed=int(
            x2.size * x2.dtype.itemsize + w1p.size * w1p.dtype.itemsize
            + w2p.size * w2p.dtype.itemsize + b1p.size * b1p.dtype.itemsize
            + b2p.size * b2p.dtype.itemsize
            + Mp * Dp * jnp.dtype(x.dtype).itemsize),
    )

    if n_h == 1:
        # Constant weight block indices -> W1/W2 stay resident across all M tiles.
        out2 = pl.pallas_call(
            functools.partial(_mlp_kernel_resident, approximate_gelu=approximate_gelu),
            out_shape=jax.ShapeDtypeStruct((Mp, Dp), x.dtype),
            grid_spec=pltpu.PrefetchScalarGridSpec(
                num_scalar_prefetch=0,
                grid=(n_m,),
                in_specs=[
                    pl.BlockSpec((tm, Dp), lambda i: (i, 0)),   # x tile
                    pl.BlockSpec((Dp, Hp), lambda i: (0, 0)),   # W1 (resident)
                    pl.BlockSpec((1, Hp), lambda i: (0, 0)),    # b1 (resident)
                    pl.BlockSpec((Hp, Dp), lambda i: (0, 0)),   # W2 (resident)
                    pl.BlockSpec((1, Dp), lambda i: (0, 0)),    # b2 (resident)
                ],
                out_specs=pl.BlockSpec((tm, Dp), lambda i: (i, 0)),
            ),
            compiler_params=pltpu.CompilerParams(
                dimension_semantics=("parallel",),
                vmem_limit_bytes=vmem_limit_bytes,
            ),
            cost_estimate=cost,
        )(x2, w1p, b1p, w2p, b2p)
    else:
        out2 = pl.pallas_call(
            functools.partial(_mlp_kernel_htiled, approximate_gelu=approximate_gelu),
            out_shape=jax.ShapeDtypeStruct((Mp, Dp), x.dtype),
            grid_spec=pltpu.PrefetchScalarGridSpec(
                num_scalar_prefetch=0,
                grid=(n_m, n_h),
                in_specs=[
                    pl.BlockSpec((tm, Dp), lambda i, h: (i, 0)),   # x tile
                    pl.BlockSpec((Dp, th), lambda i, h: (0, h)),   # W1 H-slice
                    pl.BlockSpec((1, th), lambda i, h: (0, h)),    # b1 H-slice
                    pl.BlockSpec((th, Dp), lambda i, h: (h, 0)),   # W2 H-slice
                    pl.BlockSpec((1, Dp), lambda i, h: (0, 0)),    # b2
                ],
                out_specs=pl.BlockSpec((tm, Dp), lambda i, h: (i, 0)),
                scratch_shapes=[pltpu.VMEM((tm, Dp), jnp.float32)],
            ),
            compiler_params=pltpu.CompilerParams(
                dimension_semantics=("parallel", "arbitrary"),
                vmem_limit_bytes=vmem_limit_bytes,
            ),
            cost_estimate=cost,
        )(x2, w1p, b1p, w2p, b2p)

    if (Mp, Dp) != (M, D):
        out2 = out2[:M, :D]
    return out2.reshape(B, T, D)


# --------------------------------------------------------------------------------------
# Params / reference / demo
# --------------------------------------------------------------------------------------

def init_params(key, n_embd, dtype=jnp.float32):
    """Mirrors nn.Linear default init (uniform(-1/sqrt(in), 1/sqrt(in))); (in, out) layout."""
    hidden = 4 * n_embd
    k1, k2, k3, k4 = jax.random.split(key, 4)
    bound1 = 1.0 / math.sqrt(n_embd)
    bound2 = 1.0 / math.sqrt(hidden)
    w1 = jax.random.uniform(k1, (n_embd, hidden), dtype, -bound1, bound1)
    b1 = jax.random.uniform(k2, (hidden,), dtype, -bound1, bound1)
    w2 = jax.random.uniform(k3, (hidden, n_embd), dtype, -bound2, bound2)
    b2 = jax.random.uniform(k4, (n_embd,), dtype, -bound2, bound2)
    return w1, b1, w2, b2


def mlp_reference(x, w1, b1, w2, b2, approximate_gelu=False):
    h = _gelu(x @ w1 + b1, approximate_gelu)
    return h @ w2 + b2


if __name__ == "__main__":
    # Config consistent with the module: batch=2, seq=8, n_embd=32 (hidden = 128).
    B, T, n_embd = 2, 8, 32
    key = jax.random.PRNGKey(0)
    kx, kp = jax.random.split(key)

    x = jax.random.normal(kx, (B, T, n_embd), jnp.float32)
    w1, b1, w2, b2 = init_params(kp, n_embd)

    out = jax.block_until_ready(mlp_forward(x, w1, b1, w2, b2))
    ref = mlp_reference(x, w1, b1, w2, b2)
    assert out.shape == (B, T, n_embd)
    assert jnp.allclose(out, ref, atol=2e-2, rtol=2e-2), "f32 mismatch vs reference"

    # Second check: exercise the H-chunked accumulator path + the bf16 MXU path
    # (16-row bf16 alignment) with forced tile_h.
    B2, T2, D2 = 2, 16, 128
    x_b = jax.random.normal(kx, (B2, T2, D2), jnp.float32).astype(jnp.bfloat16)
    w1b, b1b, w2b, b2b = [p.astype(jnp.bfloat16) for p in init_params(kp, D2)]
    out_b = jax.block_until_ready(mlp_forward(x_b, w1b, b1b, w2b, b2b, tile_h=128))
    ref_b = mlp_reference(x_b.astype(jnp.float32), w1b.astype(jnp.float32),
                          b1b.astype(jnp.float32), w2b.astype(jnp.float32),
                          b2b.astype(jnp.float32))
    assert out_b.shape == (B2, T2, D2)
    assert jnp.allclose(out_b.astype(jnp.float32), ref_b, atol=7e-2, rtol=7e-2), \
        "bf16 mismatch vs reference"

    print("KERNEL_OK")
</pallas_src>

<mosaic_0001>
module attributes {stable_mosaic.version = 11 : i64} {
  func.func @_mlp_kernel_resident(%arg0: i32, %arg1: memref<16x128xf32, #tpu.memory_space<vmem>>, %arg2: memref<128x128xf32, #tpu.memory_space<vmem>>, %arg3: memref<1x128xf32, #tpu.memory_space<vmem>>, %arg4: memref<128x128xf32, #tpu.memory_space<vmem>>, %arg5: memref<1x128xf32, #tpu.memory_space<vmem>>, %arg6: memref<16x128xf32, #tpu.memory_space<vmem>>) attributes {dimension_semantics = [#tpu.dimension_semantics<parallel>], iteration_bounds = array<i64: 1>, scalar_prefetch = 0 : i64, scratch_operands = 0 : i64, tpu.core_type = #tpu.core_type<tc>, window_params = [{transform_indices = @transform_0, window_bounds = array<i64: 16, 128>}, {pipeline_mode = #tpu.pipeline_mode<synchronous>, transform_indices = @transform_1, window_bounds = array<i64: 128, 128>}, {pipeline_mode = #tpu.pipeline_mode<synchronous>, transform_indices = @transform_2, window_bounds = array<i64: 1, 128>}, {pipeline_mode = #tpu.pipeline_mode<synchronous>, transform_indices = @transform_3, window_bounds = array<i64: 128, 128>}, {pipeline_mode = #tpu.pipeline_mode<synchronous>, transform_indices = @transform_4, window_bounds = array<i64: 1, 128>}, {transform_indices = @transform_5, window_bounds = array<i64: 16, 128>}]} {
    %c0 = arith.constant 0 : index
    %c0_0 = arith.constant 0 : index
    %0 = vector.load %arg1[%c0, %c0_0] : memref<16x128xf32, #tpu.memory_space<vmem>>, vector<16x128xf32>
    %c0_1 = arith.constant 0 : index
    %c0_2 = arith.constant 0 : index
    %1 = vector.load %arg2[%c0_1, %c0_2] : memref<128x128xf32, #tpu.memory_space<vmem>>, vector<128x128xf32>
    %cst = arith.constant dense<0.000000e+00> : vector<16x128xf32>
    %2 = tpu.matmul %0, %1, %cst {dimension_numbers = #tpu.dot_dimension_numbers<[1], [0], [0], [1], [0, 0, 1, 1], [], []>} : vector<16x128xf32>, vector<128x128xf32>, vector<16x128xf32> -> vector<16x128xf32>
    %c0_3 = arith.constant 0 : index
    %c0_4 = arith.constant 0 : index
    %3 = vector.load %arg3[%c0_3, %c0_4] : memref<1x128xf32, #tpu.memory_space<vmem>>, vector<1x128xf32>
    %4 = vector.broadcast %3 : vector<1x128xf32> to vector<16x128xf32>
    %5 = arith.addf %2, %4 : vector<16x128xf32>
    %cst_5 = arith.constant 5.000000e-01 : f32
    %6 = vector.broadcast %cst_5 : f32 to vector<16x128xf32>
    %7 = arith.mulf %6, %5 : vector<16x128xf32>
    %cst_6 = arith.constant 0.707106769 : f32
    %8 = vector.broadcast %cst_6 : f32 to vector<16x128xf32>
    %9 = arith.mulf %5, %8 : vector<16x128xf32>
    %10 = math.erf %9 : vector<16x128xf32>
    %cst_7 = arith.constant 1.000000e+00 : f32
    %11 = vector.broadcast %cst_7 : f32 to vector<16x128xf32>
    %12 = arith.addf %11, %10 : vector<16x128xf32>
    %13 = arith.mulf %7, %12 : vector<16x128xf32>
    %c0_8 = arith.constant 0 : index
    %c0_9 = arith.constant 0 : index
    %14 = vector.load %arg4[%c0_8, %c0_9] : memref<128x128xf32, #tpu.memory_space<vmem>>, vector<128x128xf32>
    %cst_10 = arith.constant dense<0.000000e+00> : vector<16x128xf32>
    %15 = tpu.matmul %13, %14, %cst_10 {dimension_numbers = #tpu.dot_dimension_numbers<[1], [0], [0], [1], [0, 0, 1, 1], [], []>} : vector<16x128xf32>, vector<128x128xf32>, vector<16x128xf32> -> vector<16x128xf32>
    %c0_11 = arith.constant 0 : index
    %c0_12 = arith.constant 0 : index
    %16 = vector.load %arg5[%c0_11, %c0_12] : memref<1x128xf32, #tpu.memory_space<vmem>>, vector<1x128xf32>
    %17 = vector.broadcast %16 : vector<1x128xf32> to vector<16x128xf32>
    %18 = arith.addf %15, %17 : vector<16x128xf32>
    %c0_13 = arith.constant 0 : index
    %c0_14 = arith.constant 0 : index
    %19 = vector.load %arg6[%c0_13, %c0_14] : memref<16x128xf32, #tpu.memory_space<vmem>>, vector<16x128xf32>
    tpu.vector_store %arg6[%c0_13, %c0_14], %18 {strides = array<i32>} : memref<16x128xf32, #tpu.memory_space<vmem>>, vector<16x128xf32>,
    return
  }
  func.func @transform_0(%arg0: i32) -> (i32, i32) {
    %c0_i32 = arith.constant 0 : i32
    %c0_i32_0 = arith.constant 0 : i32
    return %arg0, %c0_i32 : i32, i32
  }
  func.func @transform_1(%arg0: i32) -> (i32, i32) {
    %c0_i32 = arith.constant 0 : i32
    %c0_i32_0 = arith.constant 0 : i32
    %c0_i32_1 = arith.constant 0 : i32
    return %c0_i32, %c0_i32_0 : i32, i32
  }
  func.func @transform_2(%arg0: i32) -> (i32, i32) {
    %c0_i32 = arith.constant 0 : i32
    %c0_i32_0 = arith.constant 0 : i32
    %c0_i32_1 = arith.constant 0 : i32
    return %c0_i32, %c0_i32_0 : i32, i32
  }
  func.func @transform_3(%arg0: i32) -> (i32, i32) {
    %c0_i32 = arith.constant 0 : i32
    %c0_i32_0 = arith.constant 0 : i32
    %c0_i32_1 = arith.constant 0 : i32
    return %c0_i32, %c0_i32_0 : i32, i32
  }
  func.func @transform_4(%arg0: i32) -> (i32, i32) {
    %c0_i32 = arith.constant 0 : i32
    %c0_i32_0 = arith.constant 0 : i32
    %c0_i32_1 = arith.constant 0 : i32
    return %c0_i32, %c0_i32_0 : i32, i32
  }
  func.func @transform_5(%arg0: i32) -> (i32, i32) {
    %c0_i32 = arith.constant 0 : i32
    %c0_i32_0 = arith.constant 0 : i32
    return %arg0, %c0_i32 : i32, i32
  }
}

</mosaic_0001>

<llo_original>
// kernel: tpu_custom_call.1
$region0: #{tpu_custom_call.1}
  #allocation0 [shape = 'u32[]', space=smem, size = 0x4, offset = 0x4, fixed_abs, tag = 'smem constant byte address 0x4 - core index']
  #allocation1 [shape = 'u32[144,128]{1,0:T(1,128)}', space=vmem, size = 0x12000, scoped, tag = 'internal scratch']
  %s0 = inlined_call_operand.hbm [shape: f32[16,128], index: 0, kind: input, shape index: {}]
  %s1 = inlined_call_operand.hbm [shape: f32[128,128], index: 1, kind: input, shape index: {}]
  %s2 = inlined_call_operand.vmem [shape: f32[1,128], index: 2, kind: input, shape index: {}]
  %s3 = inlined_call_operand.hbm [shape: f32[128,128], index: 3, kind: input, shape index: {}]
  %s4 = inlined_call_operand.vmem [shape: f32[1,128], index: 4, kind: input, shape index: {}]
  %s5 = inlined_call_operand.hbm [shape: f32[16,128], index: 5, kind: output, shape index: {}]
  %s6 = sld [smem:[#allocation0]]
  $region42: #{tpu_custom_call.1} parent=0
    _
  %s8 = ssub.s32 1, %s6
  %s9 = scalar_select 0, %s8, %s6
  $region1: #{tpu_custom_call.1} parent=0
    #allocation2 [shape = 'u8[8192]{0}', space=vmem, size = 0x2000, scoped, tag = 'input window, operand 0, single buffered']
    #allocation3 [shape = 's32[1]{0}', space=sflag, size = 0x4, scoped, tag = 'scoped memory for tpu_custom_call.1']
    #allocation4 [shape = 's32[1]{0}', space=sflag, size = 0x4, scoped, tag = 'scoped memory for tpu_custom_call.1']
    #allocation5 [shape = 'u8[65536]{0}', space=vmem, size = 0x10000, scoped, tag = 'input window, operand 1, single buffered']
    #allocation6 [shape = 's32[1]{0}', space=sflag, size = 0x4, scoped, tag = 'scoped memory for tpu_custom_call.1']
    #allocation7 [shape = 'u8[65536]{0}', space=vmem, size = 0x10000, scoped, tag = 'input window, operand 3, single buffered']
    #allocation8 [shape = 'u8[8192]{0}', space=vmem, size = 0x2000, scoped, tag = 'output window, operand 0, single buffered']
    %10 = vsyncpa [#allocation3], 0
    %11 = vsyncpa [#allocation6], 0
    %12 = vsyncpa [#allocation4], 0
    // Predicated region
    $region2: #{tpu_custom_call.1} parent=1 // pred_check
      _
    $region3: #{tpu_custom_call.1} parent=1 // pred_check_branch
      %14 = sbr.rel (0) target = $region5
    $region4: #{tpu_custom_call.1} parent=1 // pred_region
      %s16 = ssub.s32 256, 256
      %17 = vsyncadd [#allocation3], %s16
      %s18 = sshll.u32 [#allocation2], 4
      %s19 = int_to_ptr.vmem [resolvable:$true] %s18
      %24 = dma.hbm_to_vmem [thread:$0]  %s0, 256, %s19, [#allocation3], 128, 128, 8
    $region5: #{tpu_custom_call.1} parent=1 // pred_fallthru
      _
    // Predicated region
    $region6: #{tpu_custom_call.1} parent=1 // pred_check
      _
    $region7: #{tpu_custom_call.1} parent=1 // pred_check_branch
      %26 = sbr.rel (0) target = $region9
    $region8: #{tpu_custom_call.1} parent=1 // pred_region
      %s28 = ssub.s32 2048, 2048
      %29 = vsyncadd [#allocation6], %s28
      %s30 = sshll.u32 [#allocation5], 4
      %s31 = int_to_ptr.vmem [resolvable:$true] %s30
      %36 = dma.hbm_to_vmem [thread:$0]  %s1, 2048, %s31, [#allocation6], 128, 128, 8
    $region9: #{tpu_custom_call.1} parent=1 // pred_fallthru
      _
    // Predicated region
    $region10: #{tpu_custom_call.1} parent=1 // pred_check
      _
    $region11: #{tpu_custom_call.1} parent=1 // pred_check_branch
      %38 = sbr.rel (0) target = $region13
    $region12: #{tpu_custom_call.1} parent=1 // pred_region
      _
    $region13: #{tpu_custom_call.1} parent=1 // pred_fallthru
      _
    // Predicated region
    $region14: #{tpu_custom_call.1} parent=1 // pred_check
      _
    $region15: #{tpu_custom_call.1} parent=1 // pred_check_branch
      %40 = sbr.rel (0) target = $region17
    $region16: #{tpu_custom_call.1} parent=1 // pred_region
      %s42 = ssub.s32 2048, 2048
      %43 = vsyncadd [#allocation6], %s42
      %s44 = sshll.u32 [#allocation7], 4
      %s45 = int_to_ptr.vmem [resolvable:$true] %s44
      %50 = dma.hbm_to_vmem [thread:$0]  %s3, 2048, %s45, [#allocation6], 128, 128, 8
    $region17: #{tpu_custom_call.1} parent=1 // pred_fallthru
      _
    // Predicated region
    $region18: #{tpu_custom_call.1} parent=1 // pred_check
      _
    $region19: #{tpu_custom_call.1} parent=1 // pred_check_branch
      %52 = sbr.rel (0) target = $region21
    $region20: #{tpu_custom_call.1} parent=1 // pred_region
      _
    $region21: #{tpu_custom_call.1} parent=1 // pred_fallthru
      _
    // Predicated region
    $region22: #{tpu_custom_call.1} parent=1 // pred_check
      _
    $region23: #{tpu_custom_call.1} parent=1 // pred_check_branch
      %54 = sbr.rel (0) target = $region25
    $region24: #{tpu_custom_call.1} parent=1 // pred_region
      %55 = dma.done [#allocation3], 256
    $region25: #{tpu_custom_call.1} parent=1 // pred_fallthru
      _
    // Predicated region
    $region26: #{tpu_custom_call.1} parent=1 // pred_check
      _
    $region27: #{tpu_custom_call.1} parent=1 // pred_check_branch
      %57 = sbr.rel (0) target = $region29
    $region28: #{tpu_custom_call.1} parent=1 // pred_region
      %58 = dma.done [#allocation6], 2048
    $region29: #{tpu_custom_call.1} parent=1 // pred_fallthru
      _
    // Predicated region
    $region30: #{tpu_custom_call.1} parent=1 // pred_check
      _
    $region31: #{tpu_custom_call.1} parent=1 // pred_check_branch
      %60 = sbr.rel (0) target = $region33
    $region32: #{tpu_custom_call.1} parent=1 // pred_region
      %61 = dma.done [#allocation6], 2048
    $region33: #{tpu_custom_call.1} parent=1 // pred_fallthru
      _
    %v62 = vld [vmem:[#allocation2] sm:$0xff]
    %v63 = vld [vmem:[#allocation2 + $0x8] sm:$0xff]
    %v64 = vld [vmem:[#allocation5] sm:$0xff]
    %v65 = vld [vmem:[#allocation5 + $0x8] sm:$0xff]
    %v66 = vld [vmem:[#allocation5 + $0x10] sm:$0xff]
    %v67 = vld [vmem:[#allocation5 + $0x18] sm:$0xff]
    %v68 = vld [vmem:[#allocation5 + $0x20] sm:$0xff]
    %v69 = vld [vmem:[#allocation5 + $0x28] sm:$0xff]
    %v70 = vld [vmem:[#allocation5 + $0x30] sm:$0xff]
    %v71 = vld [vmem:[#allocation5 + $0x38] sm:$0xff]
    %v72 = vld [vmem:[#allocation5 + $0x40] sm:$0xff]
    %v73 = vld [vmem:[#allocation5 + $0x48] sm:$0xff]
    %v74 = vld [vmem:[#allocation5 + $0x50] sm:$0xff]
    %v75 = vld [vmem:[#allocation5 + $0x58] sm:$0xff]
    %v76 = vld [vmem:[#allocation5 + $0x60] sm:$0xff]
    %v77 = vld [vmem:[#allocation5 + $0x68] sm:$0xff]
    %v78 = vld [vmem:[#allocation5 + $0x70] sm:$0xff]
    %v79 = vld [vmem:[#allocation5 + $0x78] sm:$0xff]
    %v80 = vld [vmem:[%s2] sm:$0x1]
    %v82 = vlaneseq
    %v83 = vshrl.u32 %v82, 7
    %v84 = vsub.s32 0, %v83
    %v85 = vrot.slane %v80, %v84
    %87 = vmatprep.subr.mxu0 0.0
    %88 = vmatpush1.msra.mxu0 %v64
    %89 = vmatprep.subr.mxu0 0.0
    %90 = vmatpush1.msra.mxu0 %v65
    %91 = vmatprep.subr.mxu0 0.0
    %92 = vmatpush1.msra.mxu0 %v66
    %93 = vmatprep.subr.mxu0 0.0
    %94 = vmatpush1.msra.mxu0 %v67
    %95 = vmatprep.subr.mxu0 0.0
    %96 = vmatpush1.msra.mxu0 %v68
    %97 = vmatprep.subr.mxu0 0.0
    %98 = vmatpush1.msra.mxu0 %v69
    %99 = vmatprep.subr.mxu0 0.0
    %100 = vmatpush1.msra.mxu0 %v70
    %101 = vmatprep.subr.mxu0 0.0
    %102 = vmatpush1.msra.mxu0 %v71
    %103 = vmatprep.subr.mxu0 0.0
    %104 = vmatpush1.msra.mxu0 %v72
    %105 = vmatprep.subr.mxu0 0.0
    %106 = vmatpush1.msra.mxu0 %v73
    %107 = vmatprep.subr.mxu0 0.0
    %108 = vmatpush1.msra.mxu0 %v74
    %109 = vmatprep.subr.mxu0 0.0
    %110 = vmatpush1.msra.mxu0 %v75
    %111 = vmatprep.subr.mxu0 0.0
    %112 = vmatpush1.msra.mxu0 %v76
    %113 = vmatprep.subr.mxu0 0.0
    %114 = vmatpush1.msra.mxu0 %v77
    %115 = vmatprep.subr.mxu0 0.0
    %116 = vmatpush1.msra.mxu0 %v78
    %117 = vmatprep.subr.mxu0 0.0
    %118 = vmatpush1.msra.mxu0 %v79
    %119 = vmatprep.subr.mxu0 0.0
    %120 = vmatpush1.msra.mxu0 0.0
    %121 = vmatprep.subr.mxu0 0.0
    %122 = vmatpush1.msra.mxu0 0.0
    %123 = vmatprep.subr.mxu0 0.0
    %124 = vmatpush1.msra.mxu0 0.0
    %125 = vmatprep.subr.mxu0 0.0
    %126 = vmatpush1.msra.mxu0 0.0
    %127 = vmatprep.subr.mxu0 0.0
    %128 = vmatpush1.msra.mxu0 0.0
    %129 = vmatprep.subr.mxu0 0.0
    %130 = vmatpush1.msra.mxu0 0.0
    %131 = vmatprep.subr.mxu0 0.0
    %132 = vmatpush1.msra.mxu0 0.0
    %133 = vmatprep.subr.mxu0 0.0
    %134 = vmatpush1.msra.mxu0 0.0
    %135 = vmatprep.subr.mxu0 0.0
    %136 = vmatpush1.msra.mxu0 0.0
    %137 = vmatprep.subr.mxu0 0.0
    %138 = vmatpush1.msra.mxu0 0.0
    %139 = vmatprep.subr.mxu0 0.0
    %140 = vmatpush1.msra.mxu0 0.0
    %141 = vmatprep.subr.mxu0 0.0
    %142 = vmatpush1.msra.mxu0 0.0
    %143 = vmatprep.subr.mxu0 0.0
    %144 = vmatpush1.msra.mxu0 0.0
    %145 = vmatprep.subr.mxu0 0.0
    %146 = vmatpush1.msra.mxu0 0.0
    %147 = vmatprep.subr.mxu0 0.0
    %148 = vmatpush1.msra.mxu0 0.0
    %149 = vmatprep.subr.mxu0 0.0
    %150 = vmatpush1.msra.mxu0 0.0
    %151 = vmatprep.mubr.f32.mxu0 0.0
    %152 = vmatmul.mubr.f32.gmra.mrb[0].mxu0 %v62
    %v153 = vpop.f32.mrb[0].mxu0
    %v154 = vadd.f32 %v85, %v153
    %v155 = vpop.f32.mrb[0].mxu0
    %156 = vmatprep.mubr.f32.mxu0 0.0
    %157 = vmatmul.mubr.f32.gmra.mrb[0].mxu0 %v63
    %v158 = vpop.f32.mrb[0].mxu0
    %v159 = vadd.f32 %v85, %v158
    %v160 = vpop.f32.mrb[0].mxu0
    %161 = vdwg.mxu0
    %v162 = vmul.f32 %v154, 0.5
    %v163 = vmul.f32 %v159, 0.5
    %v164 = vmul.f32 %v154, 0.70710677
    %v165 = vmul.f32 %v159, 0.70710677
    %v166 = verf.f32.pop %v164
    %v167 = verf.f32.pop %v165
    %v168 = vadd.f32 %v166, 1.0
    %v169 = vadd.f32 %v167, 1.0
    %v170 = vmul.f32 %v162, %v168
    %v171 = vmul.f32 %v163, %v169
    %v172 = vld [vmem:[#allocation7] sm:$0xff]
    %v173 = vld [vmem:[#allocation7 + $0x8] sm:$0xff]
    %v174 = vld [vmem:[#allocation7 + $0x10] sm:$0xff]
    %v175 = vld [vmem:[#allocation7 + $0x18] sm:$0xff]
    %v176 = vld [vmem:[#allocation7 + $0x20] sm:$0xff]
    %v177 = vld [vmem:[#allocation7 + $0x28] sm:$0xff]
    %v178 = vld [vmem:[#allocation7 + $0x30] sm:$0xff]
    %v179 = vld [vmem:[#allocation7 + $0x38] sm:$0xff]
    %v180 = vld [vmem:[#allocation7 + $0x40] sm:$0xff]
    %v181 = vld [vmem:[#allocation7 + $0x48] sm:$0xff]
    %v182 = vld [vmem:[#allocation7 + $0x50] sm:$0xff]
    %v183 = vld [vmem:[#allocation7 + $0x58] sm:$0xff]
    %v184 = vld [vmem:[#allocation7 + $0x60] sm:$0xff]
    %v185 = vld [vmem:[#allocation7 + $0x68] sm:$0xff]
    %v186 = vld [vmem:[#allocation7 + $0x70] sm:$0xff]
    %v187 = vld [vmem:[#allocation7 + $0x78] sm:$0xff]
    %v188 = vld [vmem:[%s4] sm:$0x1]
    %v190 = vlaneseq
    %v191 = vshrl.u32 %v190, 7
    %v192 = vsub.s32 0, %v191
    %v193 = vrot.slane %v188, %v192
    %195 = vmatprep.subr.mxu0 0.0
    %196 = vmatpush1.msra.mxu0 %v172
    %197 = vmatprep.subr.mxu0 0.0
    %198 = vmatpush1.msra.mxu0 %v173
    %199 = vmatprep.subr.mxu0 0.0
    %200 = vmatpush1.msra.mxu0 %v174
    %201 = vmatprep.subr.mxu0 0.0
    %202 = vmatpush1.msra.mxu0 %v175
    %203 = vmatprep.subr.mxu0 0.0
    %204 = vmatpush1.msra.mxu0 %v176
    %205 = vmatprep.subr.mxu0 0.0
    %206 = vmatpush1.msra.mxu0 %v177
    %207 = vmatprep.subr.mxu0 0.0
    %208 = vmatpush1.msra.mxu0 %v178
    %209 = vmatprep.subr.mxu0 0.0
    %210 = vmatpush1.msra.mxu0 %v179
    %211 = vmatprep.subr.mxu0 0.0
    %212 = vmatpush1.msra.mxu0 %v180
    %213 = vmatprep.subr.mxu0 0.0
    %214 = vmatpush1.msra.mxu0 %v181
    %215 = vmatprep.subr.mxu0 0.0
    %216 = vmatpush1.msra.mxu0 %v182
    %217 = vmatprep.subr.mxu0 0.0
    %218 = vmatpush1.msra.mxu0 %v183
    %219 = vmatprep.subr.mxu0 0.0
    %220 = vmatpush1.msra.mxu0 %v184
    %221 = vmatprep.subr.mxu0 0.0
    %222 = vmatpush1.msra.mxu0 %v185
    %223 = vmatprep.subr.mxu0 0.0
    %224 = vmatpush1.msra.mxu0 %v186
    %225 = vmatprep.subr.mxu0 0.0
    %226 = vmatpush1.msra.mxu0 %v187
    %227 = vmatprep.subr.mxu0 0.0
    %228 = vmatpush1.msra.mxu0 0.0
    %229 = vmatprep.subr.mxu0 0.0
    %230 = vmatpush1.msra.mxu0 0.0
    %231 = vmatprep.subr.mxu0 0.0
    %232 = vmatpush1.msra.mxu0 0.0
    %233 = vmatprep.subr.mxu0 0.0
    %234 = vmatpush1.msra.mxu0 0.0
    %235 = vmatprep.subr.mxu0 0.0
    %236 = vmatpush1.msra.mxu0 0.0
    %237 = vmatprep.subr.mxu0 0.0
    %238 = vmatpush1.msra.mxu0 0.0
    %239 = vmatprep.subr.mxu0 0.0
    %240 = vmatpush1.msra.mxu0 0.0
    %241 = vmatprep.subr.mxu0 0.0
    %242 = vmatpush1.msra.mxu0 0.0
    %243 = vmatprep.subr.mxu0 0.0
    %244 = vmatpush1.msra.mxu0 0.0
    %245 = vmatprep.subr.mxu0 0.0
    %246 = vmatpush1.msra.mxu0 0.0
    %247 = vmatprep.subr.mxu0 0.0
    %248 = vmatpush1.msra.mxu0 0.0
    %249 = vmatprep.subr.mxu0 0.0
    %250 = vmatpush1.msra.mxu0 0.0
    %251 = vmatprep.subr.mxu0 0.0
    %252 = vmatpush1.msra.mxu0 0.0
    %253 = vmatprep.subr.mxu0 0.0
    %254 = vmatpush1.msra.mxu0 0.0
    %255 = vmatprep.subr.mxu0 0.0
    %256 = vmatpush1.msra.mxu0 0.0
    %257 = vmatprep.subr.mxu0 0.0
    %258 = vmatpush1.msra.mxu0 0.0
    %259 = vmatprep.mubr.f32.mxu0 0.0
    %260 = vmatmul.mubr.f32.gmra.mrb[0].mxu0 %v170
    %v261 = vpop.f32.mrb[0].mxu0
    %v262 = vadd.f32 %v193, %v261
    %v263 = vpop.f32.mrb[0].mxu0
    %264 = vmatprep.mubr.f32.mxu0 0.0
    %265 = vmatmul.mubr.f32.gmra.mrb[0].mxu0 %v171
    %v266 = vpop.f32.mrb[0].mxu0
    %v267 = vadd.f32 %v193, %v266
    %v268 = vpop.f32.mrb[0].mxu0
    %269 = vdwg.mxu0
    %270 = vst [vmem:[#allocation8] sm:$0xff] %v262
    %271 = vst [vmem:[#allocation8 + $0x8] sm:$0xff] %v267
    // Predicated region
    $region34: #{tpu_custom_call.1} parent=1 // pred_check
      _
    $region35: #{tpu_custom_call.1} parent=1 // pred_check_branch
      %273 = sbr.rel (0) target = $region37
    $region36: #{tpu_custom_call.1} parent=1 // pred_region
      %s275 = ssub.s32 256, 256
      %276 = vsyncadd [#allocation4], %s275
      %s277 = sshll.u32 [#allocation8], 4
      %s278 = int_to_ptr.vmem [resolvable:$true] %s277
      %283 = dma.vmem_to_hbm [thread:$0]  %s278, 256, %s5, [#allocation4], 128, 128, 8
    $region37: #{tpu_custom_call.1} parent=1 // pred_fallthru
      _
    // Predicated region
    $region38: #{tpu_custom_call.1} parent=1 // pred_check
      _
    $region39: #{tpu_custom_call.1} parent=1 // pred_check_branch
      %285 = sbr.rel (0) target = $region41
    $region40: #{tpu_custom_call.1} parent=1 // pred_region
      %286 = dma.done [#allocation4], 256
    $region41: #{tpu_custom_call.1} parent=1 // pred_fallthru
      _
    %287 = vsyncpa [#allocation3], 1
    %288 = vsyncpa [#allocation6], 1
    %289 = vsyncpa [#allocation4], 1

</llo_original>
